<compile_context>
chip_gen: v6e
topology: v6e:2x2x1
jax: 0.10.0
libtpu: 0.0.40
codegen_flags: <defaults>
</compile_context>

<pallas_src>
import functools

import jax
import jax.numpy as jnp
from jax import lax
from jax.experimental import pallas as pl
from jax.experimental.pallas import tpu as pltpu

LANE = 128
SUBLANE = 8
CHUNK_ROWS = 128          # rows per fused sub-chunk inside the kernel body


def _tensorcores_per_chip():
    """Best-effort TensorCores-per-chip (2 on v7x / megacore, 1 on v5e/v6e)."""
    try:
        kind = jax.devices()[0].device_kind.lower()
    except Exception:
        kind = ""
    if kind:
        if "lite" in kind or "v5e" in kind or "v6e" in kind or "v6" in kind:
            return 1
        if any(s in kind for s in ("v7", "7x", "v5p", "v4", "v3", "v2")):
            return 2
    try:
        info = pltpu.get_tpu_info()
        for name in ("num_tensorcores", "tensorcores_per_chip",
                     "num_cores", "core_count"):
            v = getattr(info, name, None)
            if v is None:
                continue
            try:
                v = int(v)
            except Exception:
                continue
            if 1 <= v <= 8:
                return min(v, 2)
    except Exception:
        pass
    return 1


def _vmem_capacity_bytes():
    try:
        return int(pltpu.get_tpu_info().vmem_capacity_bytes)
    except Exception:
        return 64 << 20   # conservative (v7x physical)


def _partials_kernel(p_ref, t_ref, o_ref, *, tile_rows, chunk_rows,
                     valid_rows, blocks_per_shard, needs_mask):
    """Accumulates [sum|d|, sum d^2, count d>0] into a (3, 8, 128) partial.

    Per-lane f32 accumulation is exact up to ~2^24 addends per lane bucket
    (~1.7e10 total elements with 1024 buckets per shard) -- far beyond any
    realistic loss-tensor size.
    """
    s = pl.program_id(0)    # parallel shard axis (one per TensorCore)
    j = pl.program_id(1)    # sequential reduction axis

    @pl.when(j == 0)
    def _():
        o_ref[...] = jnp.zeros_like(o_ref)

    blk = s * blocks_per_shard + j      # un-clamped logical block id
    base = blk * tile_rows              # first row covered by this step
    num_chunks = tile_rows // chunk_rows
    folds = chunk_rows // SUBLANE

    def accumulate(masked):
        def fold(x):
            # (chunk,128) -> (chunk//8, 8, 128) is a free vreg-stack
            # reinterpretation; the axis-0 sum is pure VPU adds (no XLU).
            return jnp.sum(x.reshape(folds, SUBLANE, LANE), axis=0)

        def body(c, carry):
            a_acc, q_acc, n_acc = carry
            r = pl.multiple_of(c * chunk_rows, chunk_rows)
            pv = p_ref[pl.ds(r, chunk_rows), :].astype(jnp.float32)
            tv = t_ref[pl.ds(r, chunk_rows), :].astype(jnp.float32)
            d = pv - tv
            if masked:
                # Rows at/after `valid_rows` are grid overhang (clamped /
                # out-of-bounds reads) -> zero their contribution.
                row = base + r + lax.broadcasted_iota(
                    jnp.int32, (chunk_rows, LANE), 0)
                d = jnp.where(row < valid_rows, d, 0.0)
            return (a_acc + fold(jnp.abs(d)),
                    q_acc + fold(d * d),
                    n_acc + fold((d > 0.0).astype(jnp.float32)))

        zero = jnp.zeros((SUBLANE, LANE), jnp.float32)
        a_acc, q_acc, n_acc = lax.fori_loop(
            0, num_chunks, body, (zero, zero, zero), unroll=False)
        o_ref[0, ...] += a_acc
        o_ref[1, ...] += q_acc
        o_ref[2, ...] += n_acc

    if needs_mask:
        # Only the edge / shard-overhang blocks pay for the row mask;
        # interior blocks take the unmasked fast path.
        is_full = base + tile_rows <= valid_rows

        @pl.when(is_full)
        def _():
            accumulate(masked=False)

        @pl.when(jnp.logical_not(is_full))
        def _():
            accumulate(masked=True)
    else:
        accumulate(masked=False)


def weighted_asym_mae_mse_loss(predictions, targets, *, tile_rows=8192):
    """Pallas implementation of WeightedAsymmetricMAEandMSELoss.forward."""
    assert predictions.shape == targets.shape
    total = int(predictions.size)
    assert total > 0

    # Flatten at native dtype (no wrapper astype; the kernel upcasts to f32).
    p = predictions.reshape(-1)
    t = targets.reshape(-1)
    itemsize = max(jnp.dtype(p.dtype).itemsize, jnp.dtype(t.dtype).itemsize)

    # Ragged tail: round the flat size up to one 128-lane row.  Padded values
    # are identical zeros in BOTH tensors, so they contribute 0 to all three
    # reductions while the final mean divides by the true N.  Zero-copy for
    # any size that is already a multiple of 128.
    # TODO(synk): a fully copy-free ragged tail needs 1-D input blocks plus
    # lane-level masking of the final sub-128 chunk; the pad below costs one
    # extra HBM round-trip only when size % 128 != 0.
    pad = (-total) % LANE
    if pad:
        p = jnp.pad(p, (0, pad))
        t = jnp.pad(t, (0, pad))

    rows = (total + pad) // LANE
    n = jnp.float32(total)

    if rows < SUBLANE:
        # Tiny input (< 1024 elements): below the minimum (8,128)-tileable
        # size -- not worth a kernel launch.
        d = p.astype(jnp.float32) - t.astype(jnp.float32)
        mae = jnp.sum(jnp.abs(d)) / n
        mse = jnp.sum(d * d) / n
        cnt = jnp.sum((d > 0.0).astype(jnp.float32))
        return (cnt * mae + (n - cnt) * 2.0 * mse) / n

    p2 = p.reshape(rows, LANE)
    t2 = t.reshape(rows, LANE)

    # --- Tile sizing --------------------------------------------------------
    # Big blocks amortize the ~0.35 us per-grid-step overhead (matters most at
    # v7x's ~3.2 TB/s); keep the 4 double-buffered input blocks inside ~3/4 of
    # a 32 MiB VMEM budget, which we also request via vmem_limit_bytes so the
    # same default works on v5e's 16 MiB scoped default.
    vmem_budget = min(32 << 20, _vmem_capacity_bytes())
    cap_rows = max(SUBLANE, (vmem_budget * 3 // 4) // (2 * 2 * LANE * itemsize))
    sub_mult = max(SUBLANE, 32 // itemsize)         # 8 f32 / 16 bf16 / 32 int8
    tile = min(int(tile_rows), cap_rows, rows)
    if tile >= CHUNK_ROWS:
        tile = (tile // CHUNK_ROWS) * CHUNK_ROWS    # multiple of the sub-chunk
        chunk = CHUNK_ROWS
    else:
        tile = max(SUBLANE, (tile // sub_mult) * sub_mult)
        chunk = tile

    blocks = pl.cdiv(rows, tile)

    # Shard the reduction across TensorCores only on chips that have >1 TC
    # (v7x / megacore).  On single-TC v5e/v6e a 2-way split would only add a
    # duplicated-tile DMA + fully masked overhang step.
    tc = _tensorcores_per_chip()
    num_shards = tc if (tc > 1 and blocks >= tc) else 1
    bps = pl.cdiv(blocks, num_shards)               # blocks per shard
    needs_mask = num_shards * bps * tile > rows

    kernel = functools.partial(
        _partials_kernel,
        tile_rows=tile, chunk_rows=chunk, valid_rows=rows,
        blocks_per_shard=bps, needs_mask=needs_mask)

    def in_map(s, j):
        # Clamp overhang block indices in-bounds; those steps are fully
        # masked out inside the kernel.
        return (jnp.minimum(s * bps + j, blocks - 1), 0)

    out_bytes = num_shards * 3 * SUBLANE * LANE * 4

    partials = pl.pallas_call(
        kernel,
        out_shape=jax.ShapeDtypeStruct((num_shards, 3, SUBLANE, LANE),
                                       jnp.float32),
        grid_spec=pltpu.PrefetchScalarGridSpec(
            num_scalar_prefetch=0,
            grid=(num_shards, bps),
            in_specs=[
                pl.BlockSpec((tile, LANE), in_map),
                pl.BlockSpec((tile, LANE), in_map),
            ],
            out_specs=pl.BlockSpec((None, 3, SUBLANE, LANE),
                                   lambda s, j: (s, 0, 0, 0)),
        ),
        compiler_params=pltpu.CompilerParams(
            dimension_semantics=("parallel", "arbitrary"),
            vmem_limit_bytes=vmem_budget),
        cost_estimate=pl.CostEstimate(
            flops=8 * total,
            transcendentals=0,
            bytes_accessed=2 * rows * LANE * itemsize + out_bytes),
    )(p2, t2)

    # Tiny epilogue (num_shards * 3 * 1024 elements + ~10 scalar flops).
    sums = jnp.sum(partials, axis=(0, 2, 3))   # [sum|d|, sum d^2, count d>0]
    mae = sums[0] / n
    mse = sums[1] / n
    cnt = sums[2]
    return (cnt * mae + (n - cnt) * 2.0 * mse) / n


def _reference(predictions, targets):
    d = predictions.astype(jnp.float32) - targets.astype(jnp.float32)
    mae = jnp.mean(jnp.abs(d))
    mse = jnp.mean(d * d)
    loss = jnp.where(d > 0, mae, mse * 2.0)
    return jnp.mean(loss)


if __name__ == "__main__":
    key = jax.random.PRNGKey(0)
    kp, kt = jax.random.split(key)

    # Main check: regression-style (batch, C, H, W) input.
    shape = (2, 4, 16, 16)
    predictions = jax.random.normal(kp, shape, dtype=jnp.float32)
    targets = jax.random.normal(kt, shape, dtype=jnp.float32)

    loss_fn = jax.jit(weighted_asym_mae_mse_loss)
    out = jax.block_until_ready(loss_fn(predictions, targets))
    ref = _reference(predictions, targets)
    assert jnp.allclose(out, ref, rtol=1e-5, atol=1e-6), (out, ref)

    # Secondary check: ragged size with a tiny tile to exercise the
    # multi-block / edge-mask / (on multi-TC chips) two-shard overhang path.
    kp2, kt2 = jax.random.split(jax.random.PRNGKey(1))
    shape2 = (5, 1000)   # 5000 elems -> padded to 5120, rows=40
    p2 = jax.random.normal(kp2, shape2, dtype=jnp.float32)
    t2 = jax.random.normal(kt2, shape2, dtype=jnp.float32)
    out2 = jax.block_until_ready(
        weighted_asym_mae_mse_loss(p2, t2, tile_rows=16))
    ref2 = _reference(p2, t2)
    assert jnp.allclose(out2, ref2, rtol=1e-5, atol=1e-6), (out2, ref2)

    print("KERNEL_OK")
</pallas_src>

<mosaic_0001>
module attributes {stable_mosaic.version = 11 : i64} {
  func.func @_partials_kernel(%arg0: i32, %arg1: i32, %arg2: memref<16x128xf32, #tpu.memory_space<vmem>>, %arg3: memref<16x128xf32, #tpu.memory_space<vmem>>, %arg4: memref<1x3x8x128xf32, #tpu.memory_space<vmem>>) attributes {dimension_semantics = [#tpu.dimension_semantics<parallel>, #tpu.dimension_semantics<arbitrary>], iteration_bounds = array<i64: 1, 1>, scalar_prefetch = 0 : i64, scratch_operands = 0 : i64, tpu.core_type = #tpu.core_type<tc>, window_params = [{transform_indices = @transform_0, window_bounds = array<i64: 16, 128>}, {transform_indices = @transform_1, window_bounds = array<i64: 16, 128>}, {transform_indices = @transform_2, window_bounds = array<i64: 1, 3, 8, 128>}]} {
    %c0_i32 = arith.constant 0 : i32
    %0 = arith.cmpi eq, %arg1, %c0_i32 : i32
    %1 = arith.extui %0 : i1 to i32
    %c0_i32_0 = arith.constant 0 : i32
    %2 = arith.cmpi ne, %1, %c0_i32_0 : i32
    scf.if %2 {
      %cst_29 = arith.constant 0.000000e+00 : f32
      %44 = vector.broadcast %cst_29 : f32 to vector<3x8x128xf32>
      %c0_30 = arith.constant 0 : index
      %c0_31 = arith.constant 0 : index
      %c0_32 = arith.constant 0 : index
      %c0_33 = arith.constant 0 : index
      %45 = vector.load %arg4[%c0_30, %c0_31, %c0_32, %c0_33] : memref<1x3x8x128xf32, #tpu.memory_space<vmem>>, vector<1x3x8x128xf32>
      %46 = vector.shape_cast %45 : vector<1x3x8x128xf32> to vector<3x8x128xf32>
      %47 = vector.shape_cast %44 : vector<3x8x128xf32> to vector<1x3x8x128xf32>
      tpu.vector_store %arg4[%c0_30, %c0_31, %c0_32, %c0_33], %47 {strides = array<i32>} : memref<1x3x8x128xf32, #tpu.memory_space<vmem>>, vector<1x3x8x128xf32>,
    } else {
    }
    %cst = arith.constant 0.000000e+00 : f32
    %3 = vector.broadcast %cst : f32 to vector<8x128xf32>
    %c0_i32_1 = arith.constant 0 : i32
    %c16_i32 = arith.constant 16 : i32
    %4 = arith.muli %c0_i32_1, %c16_i32 : i32
    %5 = tpu.assume_multiple %4, 16 : i32
    %6 = arith.index_cast %5 : i32 to index
    %c0 = arith.constant 0 : index
    %7 = vector.load %arg2[%6, %c0] : memref<16x128xf32, #tpu.memory_space<vmem>>, vector<16x128xf32>
    %8 = arith.index_cast %5 : i32 to index
    %c0_2 = arith.constant 0 : index
    %9 = vector.load %arg3[%8, %c0_2] : memref<16x128xf32, #tpu.memory_space<vmem>>, vector<16x128xf32>
    %10 = arith.subf %7, %9 : vector<16x128xf32>
    %11 = math.absf %10 : vector<16x128xf32>
    %12 = vector.shape_cast %11 : vector<16x128xf32> to vector<2x8x128xf32>
    %cst_3 = arith.constant dense<0.000000e+00> : vector<8x128xf32>
    %13 = vector.multi_reduction <add>, %12, %cst_3 [0] : vector<2x8x128xf32> to vector<8x128xf32>
    %14 = arith.addf %3, %13 : vector<8x128xf32>
    %15 = arith.mulf %10, %10 : vector<16x128xf32>
    %16 = vector.shape_cast %15 : vector<16x128xf32> to vector<2x8x128xf32>
    %cst_4 = arith.constant dense<0.000000e+00> : vector<8x128xf32>
    %17 = vector.multi_reduction <add>, %16, %cst_4 [0] : vector<2x8x128xf32> to vector<8x128xf32>
    %18 = arith.addf %3, %17 : vector<8x128xf32>
    %cst_5 = arith.constant 0.000000e+00 : f32
    %19 = vector.broadcast %cst_5 : f32 to vector<16x128xf32>
    %20 = arith.cmpf ogt, %10, %19 : vector<16x128xf32>
    %21 = arith.extui %20 : vector<16x128xi1> to vector<16x128xi32>
    %22 = arith.sitofp %21 : vector<16x128xi32> to vector<16x128xf32>
    %23 = vector.shape_cast %22 : vector<16x128xf32> to vector<2x8x128xf32>
    %cst_6 = arith.constant dense<0.000000e+00> : vector<8x128xf32>
    %24 = vector.multi_reduction <add>, %23, %cst_6 [0] : vector<2x8x128xf32> to vector<8x128xf32>
    %25 = arith.addf %3, %24 : vector<8x128xf32>
    %c1_i32 = arith.constant 1 : i32
    %c0_7 = arith.constant 0 : index
    %c0_8 = arith.constant 0 : index
    %c0_9 = arith.constant 0 : index
    %c0_10 = arith.constant 0 : index
    %26 = vector.load %arg4[%c0_7, %c0_8, %c0_9, %c0_10] : memref<1x3x8x128xf32, #tpu.memory_space<vmem>>, vector<1x1x8x128xf32>
    %27 = vector.shape_cast %26 : vector<1x1x8x128xf32> to vector<8x128xf32>
    %28 = arith.addf %27, %14 : vector<8x128xf32>
    %c0_11 = arith.constant 0 : index
    %c0_12 = arith.constant 0 : index
    %c0_13 = arith.constant 0 : index
    %c0_14 = arith.constant 0 : index
    %29 = vector.load %arg4[%c0_11, %c0_12, %c0_13, %c0_14] : memref<1x3x8x128xf32, #tpu.memory_space<vmem>>, vector<1x1x8x128xf32>
    %30 = vector.shape_cast %29 : vector<1x1x8x128xf32> to vector<8x128xf32>
    %31 = vector.shape_cast %28 : vector<8x128xf32> to vector<1x1x8x128xf32>
    tpu.vector_store %arg4[%c0_11, %c0_12, %c0_13, %c0_14], %31 {strides = array<i32>} : memref<1x3x8x128xf32, #tpu.memory_space<vmem>>, vector<1x1x8x128xf32>,
    %c0_15 = arith.constant 0 : index
    %c1 = arith.constant 1 : index
    %c0_16 = arith.constant 0 : index
    %c0_17 = arith.constant 0 : index
    %32 = vector.load %arg4[%c0_15, %c1, %c0_16, %c0_17] : memref<1x3x8x128xf32, #tpu.memory_space<vmem>>, vector<1x1x8x128xf32>
    %33 = vector.shape_cast %32 : vector<1x1x8x128xf32> to vector<8x128xf32>
    %34 = arith.addf %33, %18 : vector<8x128xf32>
    %c0_18 = arith.constant 0 : index
    %c1_19 = arith.constant 1 : index
    %c0_20 = arith.constant 0 : index
    %c0_21 = arith.constant 0 : index
    %35 = vector.load %arg4[%c0_18, %c1_19, %c0_20, %c0_21] : memref<1x3x8x128xf32, #tpu.memory_space<vmem>>, vector<1x1x8x128xf32>
    %36 = vector.shape_cast %35 : vector<1x1x8x128xf32> to vector<8x128xf32>
    %37 = vector.shape_cast %34 : vector<8x128xf32> to vector<1x1x8x128xf32>
    tpu.vector_store %arg4[%c0_18, %c1_19, %c0_20, %c0_21], %37 {strides = array<i32>} : memref<1x3x8x128xf32, #tpu.memory_space<vmem>>, vector<1x1x8x128xf32>,
    %c0_22 = arith.constant 0 : index
    %c2 = arith.constant 2 : index
    %c0_23 = arith.constant 0 : index
    %c0_24 = arith.constant 0 : index
    %38 = vector.load %arg4[%c0_22, %c2, %c0_23, %c0_24] : memref<1x3x8x128xf32, #tpu.memory_space<vmem>>, vector<1x1x8x128xf32>
    %39 = vector.shape_cast %38 : vector<1x1x8x128xf32> to vector<8x128xf32>
    %40 = arith.addf %39, %25 : vector<8x128xf32>
    %c0_25 = arith.constant 0 : index
    %c2_26 = arith.constant 2 : index
    %c0_27 = arith.constant 0 : index
    %c0_28 = arith.constant 0 : index
    %41 = vector.load %arg4[%c0_25, %c2_26, %c0_27, %c0_28] : memref<1x3x8x128xf32, #tpu.memory_space<vmem>>, vector<1x1x8x128xf32>
    %42 = vector.shape_cast %41 : vector<1x1x8x128xf32> to vector<8x128xf32>
    %43 = vector.shape_cast %40 : vector<8x128xf32> to vector<1x1x8x128xf32>
    tpu.vector_store %arg4[%c0_25, %c2_26, %c0_27, %c0_28], %43 {strides = array<i32>} : memref<1x3x8x128xf32, #tpu.memory_space<vmem>>, vector<1x1x8x128xf32>,
    return
  }
  func.func @transform_0(%arg0: i32, %arg1: i32) -> (i32, i32) {
    %c1_i32 = arith.constant 1 : i32
    %0 = arith.muli %arg0, %c1_i32 : i32
    %1 = arith.addi %0, %arg1 : i32
    %c0_i32 = arith.constant 0 : i32
    %2 = arith.minsi %1, %c0_i32 : i32
    %c0_i32_0 = arith.constant 0 : i32
    %c0_i32_1 = arith.constant 0 : i32
    return %2, %c0_i32_0 : i32, i32
  }
  func.func @transform_1(%arg0: i32, %arg1: i32) -> (i32, i32) {
    %c1_i32 = arith.constant 1 : i32
    %0 = arith.muli %arg0, %c1_i32 : i32
    %1 = arith.addi %0, %arg1 : i32
    %c0_i32 = arith.constant 0 : i32
    %2 = arith.minsi %1, %c0_i32 : i32
    %c0_i32_0 = arith.constant 0 : i32
    %c0_i32_1 = arith.constant 0 : i32
    return %2, %c0_i32_0 : i32, i32
  }
  func.func @transform_2(%arg0: i32, %arg1: i32) -> (i32, i32, i32, i32) {
    %c0_i32 = arith.constant 0 : i32
    %c0_i32_0 = arith.constant 0 : i32
    %c0_i32_1 = arith.constant 0 : i32
    %c0_i32_2 = arith.constant 0 : i32
    return %arg0, %c0_i32, %c0_i32_0, %c0_i32_1 : i32, i32, i32, i32
  }
}

</mosaic_0001>

<llo_original>
// kernel: weighted_asym_mae_mse_loss.1
$region0: #{weighted_asym_mae_mse_loss.1}
  #allocation0 [shape = 'u32[]', space=smem, size = 0x4, offset = 0x4, fixed_abs, tag = 'smem constant byte address 0x4 - core index']
  #allocation1 [shape = 'u32[144,128]{1,0:T(1,128)}', space=vmem, size = 0x12000, scoped, tag = 'internal scratch']
  %s0 = inlined_call_operand.vmem [shape: f32[16,128], index: 0, kind: input, shape index: {}]
  %s1 = inlined_call_operand.vmem [shape: f32[16,128], index: 1, kind: input, shape index: {}]
  %s2 = inlined_call_operand.vmem [shape: f32[1,3,8,128], index: 2, kind: output, shape index: {}]
  %s3 = sld [smem:[#allocation0]]
  $region22: #{weighted_asym_mae_mse_loss.1} parent=0
    _
  %s5 = ssub.s32 1, %s3
  %s6 = scalar_select 0, %s5, %s3
  // Predicated region
  $region2: #{weighted_asym_mae_mse_loss.1} parent=0 // pred_check
    _
  $region3: #{weighted_asym_mae_mse_loss.1} parent=0 // pred_check_branch
    %8 = sbr.rel (0) target = $region5
  $region4: #{weighted_asym_mae_mse_loss.1} parent=0 // pred_region
    %s9 = sadd.s32 0, 0
    %p10 = scmp.lt.s32.totalorder %s9, 0
    %s11 = scalar_select %p10, %s9, 0
    %s12 = smul.u32 2, %s11
    %p13 = scmp.lt.s32.totalorder %s12, 1
    %s14 = scalar_select %p13, %s12, 1
    %s15 = smul.addr %s14, 8
    %s16 = scalar_lea.vmem %s0, %s15
    %s17 = sadd.s32 0, 0
    %p18 = scmp.lt.s32.totalorder %s17, 0
    %s19 = scalar_select %p18, %s17, 0
    %s20 = smul.u32 2, %s19
  $region5: #{weighted_asym_mae_mse_loss.1} parent=0 // pred_fallthru
    _
  // Predicated region
  $region6: #{weighted_asym_mae_mse_loss.1} parent=0 // pred_check
    _
  $region7: #{weighted_asym_mae_mse_loss.1} parent=0 // pred_check_branch
    %22 = sbr.rel (0) target = $region9
  $region8: #{weighted_asym_mae_mse_loss.1} parent=0 // pred_region
    %s23 = sadd.s32 0, 0
    %p24 = scmp.lt.s32.totalorder %s23, 0
    %s25 = scalar_select %p24, %s23, 0
    %s26 = smul.u32 2, %s25
    %p27 = scmp.lt.s32.totalorder %s26, 1
    %s28 = scalar_select %p27, %s26, 1
    %s29 = smul.addr %s28, 8
    %s30 = scalar_lea.vmem %s1, %s29
    %s31 = sadd.s32 0, 0
    %p32 = scmp.lt.s32.totalorder %s31, 0
    %s33 = scalar_select %p32, %s31, 0
    %s34 = smul.u32 2, %s33
  $region9: #{weighted_asym_mae_mse_loss.1} parent=0 // pred_fallthru
    _
  %s35 = sadd.s32 0, 0
  %p36 = scmp.lt.s32.totalorder %s35, 0
  %s37 = scalar_select %p36, %s35, 0
  %s38 = smul.u32 2, %s37
  %p39 = scmp.lt.s32.totalorder %s38, 1
  %s40 = scalar_select %p39, %s38, 1
  %s41 = smul.addr %s40, 8
  %s42 = scalar_lea.vmem %s0, %s41
  %s43 = sadd.s32 0, 0
  %p44 = scmp.lt.s32.totalorder %s43, 0
  %s45 = scalar_select %p44, %s43, 0
  %s46 = smul.u32 2, %s45
  %p47 = scmp.lt.s32.totalorder %s46, 1
  %s48 = scalar_select %p47, %s46, 1
  %s49 = smul.addr %s48, 8
  %s50 = scalar_lea.vmem %s1, %s49
  %s51 = sadd.s32 0, 0
  %p52 = scmp.lt.s32.totalorder %s51, 0
  %s53 = scalar_select %p52, %s51, 0
  %s54 = smul.u32 2, %s53
  %p55 = scmp.lt.s32.totalorder %s54, 1
  %s56 = scalar_select %p55, %s54, 1
  %s57 = smul.addr %s56, 8
  %s58 = scalar_lea.vmem %s0, %s57
  %s59 = sadd.s32 0, 0
  %p60 = scmp.lt.s32.totalorder %s59, 0
  %s61 = scalar_select %p60, %s59, 0
  %s62 = smul.u32 2, %s61
  %s63 = sadd.s32 0, 0
  %p64 = scmp.lt.s32.totalorder %s63, 0
  %s65 = scalar_select %p64, %s63, 0
  %s66 = smul.u32 2, %s65
  %p67 = scmp.lt.s32.totalorder %s66, 1
  %s68 = scalar_select %p67, %s66, 1
  %s69 = smul.addr %s68, 8
  %s70 = scalar_lea.vmem %s1, %s69
  %s71 = sadd.s32 0, 0
  %p72 = scmp.lt.s32.totalorder %s71, 0
  %s73 = scalar_select %p72, %s71, 0
  %s74 = smul.u32 2, %s73
  %p75 = scmp.eq.s32.totalorder 0, 0
  // Predicated region
  $region10: #{weighted_asym_mae_mse_loss.1} parent=0 // pred_check
    %p76 = pneg %p75
  $region11: #{weighted_asym_mae_mse_loss.1} parent=0 // pred_check_branch
    %78 = sbr.rel (%p76) target = $region13
  $region12: #{weighted_asym_mae_mse_loss.1} parent=0 // pred_region
    %79 = vst [vmem:[%s2] sm:$0xff] 0.0
    %80 = vst [vmem:[%s2 + $0x8] sm:$0xff] 0.0
    %81 = vst [vmem:[%s2 + $0x10] sm:$0xff] 0.0
  $region13: #{weighted_asym_mae_mse_loss.1} parent=0 // pred_fallthru
    _
  %v82 = vld [vmem:[%s58] sm:$0xff]
  %v83 = vld [vmem:[%s58 + $0x8] sm:$0xff]
  %v84 = vld [vmem:[%s70] sm:$0xff]
  %v85 = vld [vmem:[%s70 + $0x8] sm:$0xff]
  %v86 = vsub.f32 %v82, %v84
  %v87 = vsub.f32 %v83, %v85
  %v88 = vand.u32 2147483647, %v86
  %v89 = vand.u32 2147483647, %v87
  %v90 = vadd.f32 %v88, %v89
  %v91 = vadd.f32 %v90, 0.0
  %v92 = vmul.f32 %v86, %v86
  %v93 = vmul.f32 %v87, %v87
  %v94 = vadd.f32 %v92, %v93
  %v95 = vadd.f32 %v94, 0.0
  %vm96 = vcmp.gt.f32.partialorder %v86, 0.0
  %vm97 = vcmp.gt.f32.partialorder %v87, 0.0
  %v98 = vsel %vm96, 1, 0
  %v99 = vsel %vm97, 1, 0
  %v100 = vcvt.s32.f32 %v98
  %v101 = vcvt.s32.f32 %v99
  %v102 = vadd.f32 %v100, %v101
  %v103 = vadd.f32 %v102, 0.0
  %v104 = vld [vmem:[%s2] sm:$0xff]
  %v105 = vadd.f32 %v104, %v91
  %106 = vst [vmem:[%s2] sm:$0xff] %v105
  %s107 = scalar_lea.vmem %s2, 8
  %v108 = vld [vmem:[%s107] sm:$0xff]
  %v109 = vadd.f32 %v108, %v95
  %110 = vst [vmem:[%s107] sm:$0xff] %v109
  %s111 = scalar_lea.vmem %s2, 16
  %v112 = vld [vmem:[%s111] sm:$0xff]
  %v113 = vadd.f32 %v112, %v103
  %114 = vst [vmem:[%s111] sm:$0xff] %v113
  // Predicated region
  $region14: #{weighted_asym_mae_mse_loss.1} parent=0 // pred_check
    _
  $region15: #{weighted_asym_mae_mse_loss.1} parent=0 // pred_check_branch
    %116 = sbr.rel (0) target = $region17
  $region16: #{weighted_asym_mae_mse_loss.1} parent=0 // pred_region
    _
  $region17: #{weighted_asym_mae_mse_loss.1} parent=0 // pred_fallthru
    _
  // Predicated region
  $region18: #{weighted_asym_mae_mse_loss.1} parent=0 // pred_check
    _
  $region19: #{weighted_asym_mae_mse_loss.1} parent=0 // pred_check_branch
    %118 = sbr.rel (0) target = $region21
  $region20: #{weighted_asym_mae_mse_loss.1} parent=0 // pred_region
    _
  $region21: #{weighted_asym_mae_mse_loss.1} parent=0 // pred_fallthru
    _

</llo_original>
